<compile_context>
chip_gen: v6e
topology: v6e:2x2x1
jax: 0.10.0
libtpu: 0.0.40
codegen_flags: <defaults>
</compile_context>

<pallas_src>
import functools

import jax
import jax.numpy as jnp
from jax.experimental import pallas as pl
from jax.experimental.pallas import tpu as pltpu  # noqa: F401  (TPU backend)


def _adaint_kernel(x_ref, w_ref, b_ref, m_ref, out_ref, *, n_colors, n_int):
    # x_ref : (b, f)            input image representation
    # w_ref : (f, C*(v-1))      fused (transposed) Linear weight, all colors
    # b_ref : (1, C*(v-1))      fused bias row
    # m_ref : (C*(v-1), C*v)    block-diagonal strict-upper-triangular ones
    # out_ref: (b, C*v)         sampling coordinates, all colors, lane-dense
    logits = jnp.dot(x_ref[...], w_ref[...],
                     preferred_element_type=jnp.float32) + b_ref[...]

    # Per-color softmax over static lane slices (unrolled over C colors).
    # Exact divide for the normalization: the downstream cumsum-matmul adds up
    # to n_int probabilities, so an approximate reciprocal here amplifies into
    # O(1e-3) absolute error on the vertices (observed); exact divide keeps it
    # at f32 round-off and is negligible at these sizes.
    probs = []
    for c in range(n_colors):
        sl = logits[:, c * n_int:(c + 1) * n_int]
        mx = jnp.max(sl, axis=-1, keepdims=True)
        e = jnp.exp(sl - mx)
        s = jnp.sum(e, axis=-1, keepdims=True)
        probs.append(e / s)
    p = jnp.concatenate(probs, axis=-1)                       # (b, C*(v-1))

    # vertices[..., c, k] = sum_{i < k} p[..., c, i]  == F.pad(cumsum(p), (1,0))
    out_ref[...] = jnp.dot(p, m_ref[...],
                           preferred_element_type=jnp.float32).astype(out_ref.dtype)


def adaint_prepare(weight, bias, *, n_colors, n_vertices, adaint_share=False,
                   weights_delta=None, dtype=jnp.float32):
    """One-time parameter preprocessing (hoisted out of the per-call path).

    weight: ((n_vertices-1)*repeat, n_feats) — native nn.Linear layout.
    bias:   ((n_vertices-1)*repeat,)
    Returns (wT, bias_row, M) ready for adaint_forward.
    For a bf16 backbone pass dtype=jnp.bfloat16 for wT (dots still accumulate in f32).
    """
    v = n_vertices
    n_int = v - 1
    w = weight if weights_delta is None else weight * (1.0 + weights_delta)

    # x @ W.T == F.linear(x, W); columns of W.T are already ordered
    # (color0 interval0..interval{v-2}, color1 ..., ...).
    wT = w.T.astype(dtype)                                    # (f, repeat*n_int)
    b_row = bias.reshape(1, -1).astype(jnp.float32)           # (1, repeat*n_int)

    if adaint_share:
        # repeat_interleave over the color dim == tiling the single slab C times.
        wT = jnp.tile(wT, (1, n_colors))
        b_row = jnp.tile(b_row, (1, n_colors))

    # Block-diagonal strict-upper-triangular M: (C*n_int, C*v).
    # M[(c,i), (c',k)] = 1  iff  c == c'  and  i < k.
    rc = jnp.arange(n_colors * n_int) // n_int
    ri = jnp.arange(n_colors * n_int) % n_int
    cc = jnp.arange(n_colors * v) // v
    ck = jnp.arange(n_colors * v) % v
    M = ((rc[:, None] == cc[None, :]) &
         (ri[:, None] < ck[None, :])).astype(jnp.float32)

    return wT, b_row, M


def adaint_forward(x, wT, bias_row, M, *, n_colors, n_vertices):
    """AdaInt forward. x: (b, n_feats) -> vertices: (b, n_colors, n_vertices)."""
    b = x.shape[0]
    v = n_vertices
    kernel = functools.partial(_adaint_kernel, n_colors=n_colors, n_int=v - 1)

    # Single invocation, whole arrays in VMEM (tiny), lane-dense (b, C*v) output.
    out = pl.pallas_call(
        kernel,
        out_shape=jax.ShapeDtypeStruct((b, n_colors * v), jnp.float32),
    )(x, wT, bias_row, M)

    # Free reshape into the PyTorch return layout (b, n_colors, n_vertices).
    return out.reshape(b, n_colors, v)


def adaint_reference(x, weight, bias, *, n_colors, n_vertices,
                     adaint_share=False, weights_delta=None):
    """Pure-JAX reference mirroring the PyTorch forward."""
    w = weight if weights_delta is None else weight * (1.0 + weights_delta)
    intervals = x @ w.T + bias
    intervals = intervals.reshape(x.shape[0], -1, n_vertices - 1)
    if adaint_share:
        intervals = jnp.repeat(intervals, n_colors, axis=1)
    intervals = jax.nn.softmax(intervals, axis=-1)
    cs = jnp.cumsum(intervals, axis=-1)
    return jnp.pad(cs, ((0, 0), (0, 0), (1, 0)))


if __name__ == "__main__":
    batch = 2
    n_colors = 3
    n_vertices = 9       # => 8 intervals per color
    n_feats = 32

    key = jax.random.PRNGKey(0)
    kx, kw, kb = jax.random.split(key, 3)
    x = jax.random.normal(kx, (batch, n_feats), dtype=jnp.float32)

    ok = True
    for adaint_share in (False, True):
        repeat = 1 if adaint_share else n_colors
        out_dim = (n_vertices - 1) * repeat
        weight = 0.05 * jax.random.normal(kw, (out_dim, n_feats), dtype=jnp.float32)
        bias = jnp.ones((out_dim,), dtype=jnp.float32) + \
            0.1 * jax.random.normal(kb, (out_dim,), dtype=jnp.float32)

        # One-time parameter prep (hoisted out of the forward path).
        wT, b_row, M = adaint_prepare(weight, bias,
                                      n_colors=n_colors, n_vertices=n_vertices,
                                      adaint_share=adaint_share)

        vertices = adaint_forward(x, wT, b_row, M,
                                  n_colors=n_colors, n_vertices=n_vertices)
        vertices = jax.block_until_ready(vertices)

        ref = adaint_reference(x, weight, bias,
                               n_colors=n_colors, n_vertices=n_vertices,
                               adaint_share=adaint_share)

        assert vertices.shape == (batch, n_colors, n_vertices), vertices.shape
        # Exact softmax divide in the kernel => only f32 round-off remains.
        if not jnp.allclose(vertices, ref, rtol=1e-5, atol=1e-5):
            ok = False
            print("mismatch (share=%s): max abs err = %e" %
                  (adaint_share, float(jnp.max(jnp.abs(vertices - ref)))))

    if ok:
        print("KERNEL_OK")
</pallas_src>

<mosaic_0001>
module attributes {stable_mosaic.version = 11 : i64} {
  func.func @_adaint_kernel(%arg0: memref<2x32xf32, #tpu.memory_space<vmem>>, %arg1: memref<32x24xf32, #tpu.memory_space<vmem>>, %arg2: memref<1x24xf32, #tpu.memory_space<vmem>>, %arg3: memref<24x27xf32, #tpu.memory_space<vmem>>, %arg4: memref<2x27xf32, #tpu.memory_space<vmem>>) attributes {dimension_semantics = [], scalar_prefetch = 0 : i64, scratch_operands = 0 : i64, tpu.core_type = #tpu.core_type<tc>} {
    %c0 = arith.constant 0 : index
    %c0_0 = arith.constant 0 : index
    %0 = vector.load %arg0[%c0, %c0_0] : memref<2x32xf32, #tpu.memory_space<vmem>>, vector<2x32xf32>
    %c0_1 = arith.constant 0 : index
    %c0_2 = arith.constant 0 : index
    %1 = vector.load %arg1[%c0_1, %c0_2] : memref<32x24xf32, #tpu.memory_space<vmem>>, vector<32x24xf32>
    %cst = arith.constant dense<0.000000e+00> : vector<2x24xf32>
    %2 = tpu.matmul %0, %1, %cst {dimension_numbers = #tpu.dot_dimension_numbers<[1], [0], [0], [1], [0, 0, 1, 1], [], []>} : vector<2x32xf32>, vector<32x24xf32>, vector<2x24xf32> -> vector<2x24xf32>
    %c0_3 = arith.constant 0 : index
    %c0_4 = arith.constant 0 : index
    %3 = vector.load %arg2[%c0_3, %c0_4] : memref<1x24xf32, #tpu.memory_space<vmem>>, vector<1x24xf32>
    %4 = vector.broadcast %3 : vector<1x24xf32> to vector<2x24xf32>
    %5 = arith.addf %2, %4 : vector<2x24xf32>
    %6 = vector.extract_strided_slice %5 {offsets = [0, 0], sizes = [2, 8], strides = [1, 1]} : vector<2x24xf32> to vector<2x8xf32>
    %cst_5 = arith.constant dense<0xFF800000> : vector<2xf32>
    %7 = vector.multi_reduction <maximumf>, %6, %cst_5 [1] : vector<2x8xf32> to vector<2xf32>
    %8 = vector.shape_cast %7 : vector<2xf32> to vector<2x1xf32>
    %9 = vector.broadcast %8 : vector<2x1xf32> to vector<2x8xf32>
    %10 = arith.subf %6, %9 : vector<2x8xf32>
    %11 = math.exp %10 : vector<2x8xf32>
    %cst_6 = arith.constant dense<0.000000e+00> : vector<2xf32>
    %12 = vector.multi_reduction <add>, %11, %cst_6 [1] : vector<2x8xf32> to vector<2xf32>
    %13 = vector.shape_cast %12 : vector<2xf32> to vector<2x1xf32>
    %14 = vector.broadcast %13 : vector<2x1xf32> to vector<2x8xf32>
    %15 = arith.divf %11, %14 : vector<2x8xf32>
    %16 = vector.extract_strided_slice %5 {offsets = [0, 8], sizes = [2, 8], strides = [1, 1]} : vector<2x24xf32> to vector<2x8xf32>
    %cst_7 = arith.constant dense<0xFF800000> : vector<2xf32>
    %17 = vector.multi_reduction <maximumf>, %16, %cst_7 [1] : vector<2x8xf32> to vector<2xf32>
    %18 = vector.shape_cast %17 : vector<2xf32> to vector<2x1xf32>
    %19 = vector.broadcast %18 : vector<2x1xf32> to vector<2x8xf32>
    %20 = arith.subf %16, %19 : vector<2x8xf32>
    %21 = math.exp %20 : vector<2x8xf32>
    %cst_8 = arith.constant dense<0.000000e+00> : vector<2xf32>
    %22 = vector.multi_reduction <add>, %21, %cst_8 [1] : vector<2x8xf32> to vector<2xf32>
    %23 = vector.shape_cast %22 : vector<2xf32> to vector<2x1xf32>
    %24 = vector.broadcast %23 : vector<2x1xf32> to vector<2x8xf32>
    %25 = arith.divf %21, %24 : vector<2x8xf32>
    %26 = vector.extract_strided_slice %5 {offsets = [0, 16], sizes = [2, 8], strides = [1, 1]} : vector<2x24xf32> to vector<2x8xf32>
    %cst_9 = arith.constant dense<0xFF800000> : vector<2xf32>
    %27 = vector.multi_reduction <maximumf>, %26, %cst_9 [1] : vector<2x8xf32> to vector<2xf32>
    %28 = vector.shape_cast %27 : vector<2xf32> to vector<2x1xf32>
    %29 = vector.broadcast %28 : vector<2x1xf32> to vector<2x8xf32>
    %30 = arith.subf %26, %29 : vector<2x8xf32>
    %31 = math.exp %30 : vector<2x8xf32>
    %cst_10 = arith.constant dense<0.000000e+00> : vector<2xf32>
    %32 = vector.multi_reduction <add>, %31, %cst_10 [1] : vector<2x8xf32> to vector<2xf32>
    %33 = vector.shape_cast %32 : vector<2xf32> to vector<2x1xf32>
    %34 = vector.broadcast %33 : vector<2x1xf32> to vector<2x8xf32>
    %35 = arith.divf %31, %34 : vector<2x8xf32>
    %36 = tpu.concatenate %15, %25, %35 in 1 : vector<2x8xf32>, vector<2x8xf32>, vector<2x8xf32> -> vector<2x24xf32>
    %c0_11 = arith.constant 0 : index
    %c0_12 = arith.constant 0 : index
    %37 = vector.load %arg3[%c0_11, %c0_12] : memref<24x27xf32, #tpu.memory_space<vmem>>, vector<24x27xf32>
    %cst_13 = arith.constant dense<0.000000e+00> : vector<2x27xf32>
    %38 = tpu.matmul %36, %37, %cst_13 {dimension_numbers = #tpu.dot_dimension_numbers<[1], [0], [0], [1], [0, 0, 1, 1], [], []>} : vector<2x24xf32>, vector<24x27xf32>, vector<2x27xf32> -> vector<2x27xf32>
    %c0_14 = arith.constant 0 : index
    %c0_15 = arith.constant 0 : index
    %39 = vector.load %arg4[%c0_14, %c0_15] : memref<2x27xf32, #tpu.memory_space<vmem>>, vector<2x27xf32>
    tpu.vector_store %arg4[%c0_14, %c0_15], %38 {strides = array<i32>} : memref<2x27xf32, #tpu.memory_space<vmem>>, vector<2x27xf32>,
    return
  }
}

</mosaic_0001>

<llo_original>
// kernel: tpu_custom_call.1
$region0: #{tpu_custom_call.1}
  #allocation0 [shape = 'u32[]', space=smem, size = 0x4, offset = 0x4, fixed_abs, tag = 'smem constant byte address 0x4 - core index']
  #allocation1 [shape = 'u32[144,128]{1,0:T(1,128)}', space=vmem, size = 0x12000, scoped, tag = 'internal scratch']
  %s0 = inlined_call_operand.vmem [shape: f32[2,32], index: 0, kind: input, shape index: {}]
  %s1 = inlined_call_operand.vmem [shape: f32[32,24], index: 1, kind: input, shape index: {}]
  %s2 = inlined_call_operand.vmem [shape: f32[1,24], index: 2, kind: input, shape index: {}]
  %s3 = inlined_call_operand.vmem [shape: f32[24,27], index: 3, kind: input, shape index: {}]
  %s4 = inlined_call_operand.hbm [shape: f32[2,27], index: 4, kind: output, shape index: {}]
  %s5 = sld [smem:[#allocation0]]
  $region26: #{tpu_custom_call.1} parent=0
    _
  %s7 = ssub.s32 1, %s5
  %s8 = scalar_select 0, %s7, %s5
  $region1: #{tpu_custom_call.1} parent=0
    #allocation2 [shape = 'u8[1024]{0}', space=vmem, size = 0x400, scoped, tag = 'output window, operand 0, single buffered']
    #allocation3 [shape = 's32[1]{0}', space=sflag, size = 0x4, scoped, tag = 'scoped memory for tpu_custom_call.1']
    %9 = vsyncpa [#allocation3], 0
    // Predicated region
    $region2: #{tpu_custom_call.1} parent=1 // pred_check
      _
    $region3: #{tpu_custom_call.1} parent=1 // pred_check_branch
      %11 = sbr.rel (0) target = $region5
    $region4: #{tpu_custom_call.1} parent=1 // pred_region
      _
    $region5: #{tpu_custom_call.1} parent=1 // pred_fallthru
      _
    // Predicated region
    $region6: #{tpu_custom_call.1} parent=1 // pred_check
      _
    $region7: #{tpu_custom_call.1} parent=1 // pred_check_branch
      %13 = sbr.rel (0) target = $region9
    $region8: #{tpu_custom_call.1} parent=1 // pred_region
      _
    $region9: #{tpu_custom_call.1} parent=1 // pred_fallthru
      _
    // Predicated region
    $region10: #{tpu_custom_call.1} parent=1 // pred_check
      _
    $region11: #{tpu_custom_call.1} parent=1 // pred_check_branch
      %15 = sbr.rel (0) target = $region13
    $region12: #{tpu_custom_call.1} parent=1 // pred_region
      _
    $region13: #{tpu_custom_call.1} parent=1 // pred_fallthru
      _
    // Predicated region
    $region14: #{tpu_custom_call.1} parent=1 // pred_check
      _
    $region15: #{tpu_custom_call.1} parent=1 // pred_check_branch
      %17 = sbr.rel (0) target = $region17
    $region16: #{tpu_custom_call.1} parent=1 // pred_region
      _
    $region17: #{tpu_custom_call.1} parent=1 // pred_fallthru
      _
    %v18 = vld [vmem:[%s0] sm:$0x3]
    %v19 = vld [vmem:[%s1] sm:$0xff]
    %v20 = vld [vmem:[%s1 + $0x8] sm:$0xff]
    %v21 = vld [vmem:[%s1 + $0x10] sm:$0xff]
    %v22 = vld [vmem:[%s1 + $0x18] sm:$0xff]
    %v23 = vld [vmem:[%s2] sm:$0x1]
    %v25 = vlaneseq
    %v26 = vshrl.u32 %v25, 7
    %v27 = vsub.s32 0, %v26
    %v28 = vrot.slane %v23, %v27
    %vm30 = vcmask 261120
    %v32 = vsel %vm30, %v18, 0
    %34 = vmatprep.subr.mxu0 0.0
    %35 = vmatpush1.msra.mxu0 0.0
    %36 = vmatprep.subr.mxu0 0.0
    %37 = vmatpush1.msra.mxu0 0.0
    %38 = vmatprep.subr.mxu0 0.0
    %39 = vmatpush1.msra.mxu0 0.0
    %40 = vmatprep.subr.mxu0 0.0
    %41 = vmatpush1.msra.mxu0 0.0
    %42 = vmatprep.subr.mxu0 0.0
    %43 = vmatpush1.msra.mxu0 0.0
    %44 = vmatprep.subr.mxu0 0.0
    %45 = vmatpush1.msra.mxu0 0.0
    %46 = vmatprep.subr.mxu0 0.0
    %47 = vmatpush1.msra.mxu0 0.0
    %48 = vmatprep.subr.mxu0 0.0
    %49 = vmatpush1.msra.mxu0 0.0
    %50 = vmatprep.subr.mxu0 0.0
    %51 = vmatpush1.msra.mxu0 0.0
    %52 = vmatprep.subr.mxu0 0.0
    %53 = vmatpush1.msra.mxu0 0.0
    %54 = vmatprep.subr.mxu0 0.0
    %55 = vmatpush1.msra.mxu0 0.0
    %56 = vmatprep.subr.mxu0 0.0
    %57 = vmatpush1.msra.mxu0 0.0
    %58 = vmatprep.subr.mxu0 0.0
    %59 = vmatpush1.msra.mxu0 %v22
    %60 = vmatprep.subr.mxu0 0.0
    %61 = vmatpush1.msra.mxu0 %v21
    %62 = vmatprep.subr.mxu0 0.0
    %63 = vmatpush1.msra.mxu0 %v20
    %64 = vmatprep.subr.mxu0 0.0
    %65 = vmatpush1.msra.mxu0 %v19
    %66 = vmatprep.subr.mxu0 0.0
    %67 = vmatpush2.msra.mxu0 0.0
    %68 = vmatprep.subr.mxu0 0.0
    %69 = vmatpush2.msra.mxu0 0.0
    %70 = vmatprep.subr.mxu0 0.0
    %71 = vmatpush2.msra.mxu0 0.0
    %72 = vmatprep.subr.mxu0 0.0
    %73 = vmatpush2.msra.mxu0 0.0
    %74 = vmatprep.subr.mxu0 0.0
    %75 = vmatpush2.msra.mxu0 0.0
    %76 = vmatprep.subr.mxu0 0.0
    %77 = vmatpush2.msra.mxu0 0.0
    %78 = vmatprep.subr.mxu0 0.0
    %79 = vmatpush2.msra.mxu0 0.0
    %80 = vmatprep.subr.mxu0 0.0
    %81 = vmatpush2.msra.mxu0 0.0
    %82 = vmatprep.subr.mxu0 0.0
    %83 = vmatpush2.msra.mxu0 0.0
    %84 = vmatprep.subr.mxu0 0.0
    %85 = vmatpush2.msra.mxu0 0.0
    %86 = vmatprep.subr.mxu0 0.0
    %87 = vmatpush2.msra.mxu0 0.0
    %88 = vmatprep.subr.mxu0 0.0
    %89 = vmatpush2.msra.mxu0 0.0
    %90 = vmatprep.subr.mxu0 0.0
    %91 = vmatpush2.msra.mxu0 0.0
    %92 = vmatprep.subr.mxu0 0.0
    %93 = vmatpush2.msra.mxu0 0.0
    %94 = vmatprep.subr.mxu0 0.0
    %95 = vmatpush2.msra.mxu0 0.0
    %96 = vmatprep.subr.mxu0 0.0
    %97 = vmatpush2.msra.mxu0 0.0
    %98 = vmatprep.mubr.f32.mxu0 0.0
    %99 = vmatmul.mubr.f32.gmra.mxu0 %v32
    %v100 = vpop.f32.mrf.mxu0
    %v101 = vadd.f32 %v28, %v100
    %v102 = vpop.f32.mrf.mxu0
    %103 = vdwg.mxu0
    %vm104 = vcmask 58368
    %v105 = vsel %vm104, %v101, -inf
    %106 = vmax.xlane.f32.xlu0 %v105
    %v107 = vpop.xlane.xlu0 %106
    %v108 = vsub.f32 %v101, %v107
    %v109 = vmul.f32 %v108, 1.442695
    %v110 = vpow.pop %v109
    %v111 = vsel %vm104, %v110, 0.0
    %112 = vadd.xlane.f32.xlu0 %v111
    %v113 = vpop.xlane.xlu0 %112
    %v114 = vrcp.pop %v113
    %v115 = vmul.f32 %v110, %v114
    %vm116 = vcmask 123968
    %v117 = vsel %vm116, %v101, -inf
    %118 = vmax.xlane.f32.xlu0 %v117
    %v119 = vpop.xlane.xlu0 %118
    %v120 = vsub.f32 %v101, %v119
    %v121 = vmul.f32 %v120, 1.442695
    %v122 = vpow.pop %v121
    %124 = vrot.lane.b32.xlu0 %v122, 120
    %v125 = vpop.permute.xlu0 %124
    %v127 = vsel %vm104, %v125, 0.0
    %128 = vadd.xlane.f32.xlu0 %v127
    %v129 = vpop.xlane.xlu0 %128
    %v130 = vrcp.pop %v129
    %v131 = vmul.f32 %v122, %v130
    %vm132 = vcmask 189568
    %v133 = vsel %vm132, %v101, -inf
    %134 = vmax.xlane.f32.xlu0 %v133
    %v135 = vpop.xlane.xlu0 %134
    %v136 = vsub.f32 %v101, %v135
    %v137 = vmul.f32 %v136, 1.442695
    %v138 = vpow.pop %v137
    %140 = vrot.lane.b32.xlu0 %v138, 112
    %v141 = vpop.permute.xlu0 %140
    %v143 = vsel %vm104, %v141, 0.0
    %144 = vadd.xlane.f32.xlu0 %v143
    %v145 = vpop.xlane.xlu0 %144
    %v146 = vrcp.pop %v145
    %v147 = vmul.f32 %v138, %v146
    %vm148 = vcmask 64512
    %v149 = vsel %vm148, %v115, %v131
    %vm150 = vcmask 130048
    %v151 = vsel %vm150, %v149, %v147
    %v152 = vld [vmem:[%s3] sm:$0xff]
    %v153 = vld [vmem:[%s3 + $0x8] sm:$0xff]
    %v154 = vld [vmem:[%s3 + $0x10] sm:$0xff]
    %vm155 = vcmask 195584
    %v157 = vsel %vm155, %v151, 0
    %159 = vmatprep.subr.mxu0 0.0
    %160 = vmatpush1.msra.mxu0 0.0
    %161 = vmatprep.subr.mxu0 0.0
    %162 = vmatpush1.msra.mxu0 0.0
    %163 = vmatprep.subr.mxu0 0.0
    %164 = vmatpush1.msra.mxu0 0.0
    %165 = vmatprep.subr.mxu0 0.0
    %166 = vmatpush1.msra.mxu0 0.0
    %167 = vmatprep.subr.mxu0 0.0
    %168 = vmatpush1.msra.mxu0 0.0
    %169 = vmatprep.subr.mxu0 0.0
    %170 = vmatpush1.msra.mxu0 0.0
    %171 = vmatprep.subr.mxu0 0.0
    %172 = vmatpush1.msra.mxu0 0.0
    %173 = vmatprep.subr.mxu0 0.0
    %174 = vmatpush1.msra.mxu0 0.0
    %175 = vmatprep.subr.mxu0 0.0
    %176 = vmatpush1.msra.mxu0 0.0
    %177 = vmatprep.subr.mxu0 0.0
    %178 = vmatpush1.msra.mxu0 0.0
    %179 = vmatprep.subr.mxu0 0.0
    %180 = vmatpush1.msra.mxu0 0.0
    %181 = vmatprep.subr.mxu0 0.0
    %182 = vmatpush1.msra.mxu0 0.0
    %183 = vmatprep.subr.mxu0 0.0
    %184 = vmatpush1.msra.mxu0 0.0
    %185 = vmatprep.subr.mxu0 0.0
    %186 = vmatpush1.msra.mxu0 %v154
    %187 = vmatprep.subr.mxu0 0.0
    %188 = vmatpush1.msra.mxu0 %v153
    %189 = vmatprep.subr.mxu0 0.0
    %190 = vmatpush1.msra.mxu0 %v152
    %191 = vmatprep.subr.mxu0 0.0
    %192 = vmatpush2.msra.mxu0 0.0
    %193 = vmatprep.subr.mxu0 0.0
    %194 = vmatpush2.msra.mxu0 0.0
    %195 = vmatprep.subr.mxu0 0.0
    %196 = vmatpush2.msra.mxu0 0.0
    %197 = vmatprep.subr.mxu0 0.0
    %198 = vmatpush2.msra.mxu0 0.0
    %199 = vmatprep.subr.mxu0 0.0
    %200 = vmatpush2.msra.mxu0 0.0
    %201 = vmatprep.subr.mxu0 0.0
    %202 = vmatpush2.msra.mxu0 0.0
    %203 = vmatprep.subr.mxu0 0.0
    %204 = vmatpush2.msra.mxu0 0.0
    %205 = vmatprep.subr.mxu0 0.0
    %206 = vmatpush2.msra.mxu0 0.0
    %207 = vmatprep.subr.mxu0 0.0
    %208 = vmatpush2.msra.mxu0 0.0
    %209 = vmatprep.subr.mxu0 0.0
    %210 = vmatpush2.msra.mxu0 0.0
    %211 = vmatprep.subr.mxu0 0.0
    %212 = vmatpush2.msra.mxu0 0.0
    %213 = vmatprep.subr.mxu0 0.0
    %214 = vmatpush2.msra.mxu0 0.0
    %215 = vmatprep.subr.mxu0 0.0
    %216 = vmatpush2.msra.mxu0 0.0
    %217 = vmatprep.subr.mxu0 0.0
    %218 = vmatpush2.msra.mxu0 0.0
    %219 = vmatprep.subr.mxu0 0.0
    %220 = vmatpush2.msra.mxu0 0.0
    %221 = vmatprep.subr.mxu0 0.0
    %222 = vmatpush2.msra.mxu0 0.0
    %223 = vmatprep.mubr.f32.mxu0 0.0
    %224 = vmatmul.mubr.f32.gmra.mxu0 %v157
    %v225 = vpop.f32.mrf.mxu0
    %v226 = vadd.f32 0.0, %v225
    %v227 = vpop.f32.mrf.mxu0
    %228 = vdwg.mxu0
    %vm229 = vcmask 214016
    %230 = vst.msk [vmem:[#allocation2] sm:$0x3] %vm229, %v226
    // Predicated region
    $region18: #{tpu_custom_call.1} parent=1 // pred_check
      _
    $region19: #{tpu_custom_call.1} parent=1 // pred_check_branch
      %232 = sbr.rel (0) target = $region21
    $region20: #{tpu_custom_call.1} parent=1 // pred_region
      %s234 = ssub.s32 32, 32
      %235 = vsyncadd [#allocation3], %s234
      %s237 = sshll.u32 [#allocation2], 4
      %s238 = int_to_ptr.vmem [resolvable:$true] %s237
      %240 = dma.vmem_to_hbm [thread:$0]  %s238, 32, %s4, [#allocation3]
    $region21: #{tpu_custom_call.1} parent=1 // pred_fallthru
      _
    // Predicated region
    $region22: #{tpu_custom_call.1} parent=1 // pred_check
      _
    $region23: #{tpu_custom_call.1} parent=1 // pred_check_branch
      %242 = sbr.rel (0) target = $region25
    $region24: #{tpu_custom_call.1} parent=1 // pred_region
      %243 = dma.done [#allocation3], 32
    $region25: #{tpu_custom_call.1} parent=1 // pred_fallthru
      _
    %244 = vsyncpa [#allocation3], 1

</llo_original>
